<compile_context>
chip_gen: v5e
topology: v5e:2x2
jax: 0.10.0
libtpu: 0.0.40
codegen_flags: <defaults>
</compile_context>

<pallas_src>
import numpy as np
import jax
import jax.numpy as jnp
from jax.experimental import pallas as pl
from jax.experimental.pallas import tpu as pltpu


def _round_up(x, m):
    return (x + m - 1) // m * m


def _vmem_physical_bytes():
    # Generation-aware physical VMEM (v5e/v6e: 128 MiB, v7x: 64 MiB per TC).
    try:
        return int(pltpu.get_tpu_info().vmem_capacity_bytes)
    except Exception:
        return 64 << 20   # conservative fallback, legal on every generation


def _vmem_limit(nbytes):
    # working set * 2 (double buffering) + headroom, capped at 75% of the
    # physical VMEM of this generation (keeps compiler-scratch headroom on
    # v7x instead of requesting its entire 64 MiB; lets v5e/v6e exceed 64).
    cap = (_vmem_physical_bytes() * 3) // 4
    want = 2 * int(nbytes) + (2 << 20)
    return int(min(cap, max(want, 4 << 20)))


# -----------------------------------------------------------------------------
# Kernel 1: additive attention + masked softmax + context vector + LSTM cell.
# -----------------------------------------------------------------------------
def attention_lstm_kernel(
    embed_ref,   # (Bp, D)     bf16  embedded input token (dropout = identity)
    h0_ref,      # (Bp, H)     bf16  previous hidden state
    c0_ref,      # (Bp, H)     f32   previous cell state (elementwise only)
    enc_ref,     # (Bp, S, H)  bf16  encoder outputs (keys == values)
    kproj_ref,   # (Bp, S, H)  bf16  hoisted enc @ W1_k + b1 (per sequence)
    mask_ref,    # (Bp, S)     i32   nonzero = padded source position
    w1q_ref,     # (H, H)      bf16  att_fc_1 query half (W^T)
    w2_ref,      # (1, H)      f32   att_fc_2 weight (row vector)
    wih_e_ref,   # (D, 4H)     bf16  LSTM W_ih^T rows for embed  (gates i|f|g|o)
    wih_a_ref,   # (H, 4H)     bf16  LSTM W_ih^T rows for att_vec
    whh_ref,     # (H, 4H)     bf16  LSTM W_hh^T
    b_ref,       # (1, 4H)     f32   b_ih + b_hh
    h1_ref,      # (Bp, H)     f32   out: new hidden
    c1_ref,      # (Bp, H)     f32   out: new cell
    h1bf_ref,    # (Bp, H)     bf16  out: new hidden, MXU-ready for kernel 2
    attbf_ref,   # (Bp, H)     bf16  out: context vector, MXU-ready for kernel 2
):
    f32 = jnp.float32
    bf16 = jnp.bfloat16
    H = h0_ref.shape[1]
    S = enc_ref.shape[1]

    embed_bf = embed_ref[...]
    h0_bf = h0_ref[...]
    c0 = c0_ref[...]

    # ---- additive ('concat') attention; key projection hoisted per sequence.
    # att_fc_2's scalar bias is dropped: softmax is shift-invariant.
    q_proj = jnp.dot(h0_bf, w1q_ref[...], preferred_element_type=f32)       # (B, H)
    e_hid = jnp.tanh(q_proj[:, None, :] + kproj_ref[...].astype(f32))       # (B, S, H)
    energy = jnp.sum(e_hid * w2_ref[...][None, :, :], axis=-1)              # (B, S)

    # masked_fill(mask, -1e10) then softmax over the source dimension
    energy = jnp.where(mask_ref[...] != 0, jnp.float32(-1.0e10), energy)
    m = jnp.max(energy, axis=-1, keepdims=True)
    p = jnp.exp(energy - m)
    att_w = p * pl.reciprocal(jnp.sum(p, axis=-1, keepdims=True), approx=True)

    # ---- context vector.  For small, VMEM-resident S a VPU weighted
    # accumulate beats the M=1 batched MXU matmul (which underfills sublanes
    # and pays drain latency per batch element); MXU path kept for large S.
    if S <= 64:
        enc_f = enc_ref[...].astype(f32)
        att_vec = jnp.zeros((att_w.shape[0], H), f32)
        for s in range(S):                                    # static unroll
            att_vec = att_vec + att_w[:, s:s + 1] * enc_f[:, s, :]
    else:
        att_vec = jnp.einsum(
            "bqs,bsh->bqh", att_w[:, None, :].astype(bf16), enc_ref[...],
            preferred_element_type=f32)[:, 0, :]

    # ---- single LSTM step on cat(embed_x, att_vec): 3 lane-dense dots with
    # concatenated (., 4H) gate weights (PyTorch gate order i, f, g, o).
    gates = (
        jnp.dot(embed_bf, wih_e_ref[...], preferred_element_type=f32)
        + jnp.dot(att_vec.astype(bf16), wih_a_ref[...], preferred_element_type=f32)
        + jnp.dot(h0_bf, whh_ref[...], preferred_element_type=f32)
        + b_ref[...]
    )                                                                        # (B, 4H)
    i_g = jax.nn.sigmoid(gates[:, 0 * H:1 * H])
    f_g = jax.nn.sigmoid(gates[:, 1 * H:2 * H])
    g_g = jnp.tanh(gates[:, 2 * H:3 * H])
    o_g = jax.nn.sigmoid(gates[:, 3 * H:4 * H])
    c1 = f_g * c0 + i_g * g_g
    h1 = o_g * jnp.tanh(c1)

    h1_ref[...] = h1
    c1_ref[...] = c1
    h1bf_ref[...] = h1.astype(bf16)
    attbf_ref[...] = att_vec.astype(bf16)


# -----------------------------------------------------------------------------
# Kernel 2: vocab-tiled output projection, one lane-dense dot per tile.
# -----------------------------------------------------------------------------
def vocab_proj_kernel(
    cat_ref,     # (Bp, Kp)      bf16  [embed | h1 | att_vec | 0-pad]
    w_ref,       # (Kp, TILE_V)  bf16  stacked decoder_out W^T tile (0-padded rows)
    b_ref,       # (1, TILE_V)   f32
    logits_ref,  # (Bp, TILE_V)  f32 out
):
    logits_ref[...] = (
        jnp.dot(cat_ref[...], w_ref[...], preferred_element_type=jnp.float32)
        + b_ref[...]
    )


# -----------------------------------------------------------------------------
# Hoisted (once per model): weight relayout / cast / pad.
# -----------------------------------------------------------------------------
def prepare_params(params, tile_v=512):
    bf = jnp.bfloat16
    D = params["w_ih_e"].shape[0]
    H = params["w_hh"].shape[0]
    V = params["b_out"].shape[1]

    K = D + 2 * H
    Kp = _round_up(K, 128)                      # lane-dense contraction depth
    tile_v = _round_up(min(tile_v, _round_up(V, 128)), 128)
    Vp = _round_up(V, tile_v)

    # decoder_out Linear(3H, V): stack [W_e; W_h; W_a] rows, zero-pad K and V.
    w_out = jnp.concatenate(
        [params["w_out_e"], params["w_out_h"], params["w_out_a"]], axis=0)   # (K, V)
    w_out = jnp.pad(w_out, ((0, Kp - K), (0, Vp - V))).astype(bf)            # (Kp, Vp)
    b_out = jnp.pad(params["b_out"], ((0, 0), (0, Vp - V)))                  # (1, Vp)

    return dict(
        D=D, H=H, V=V, Kp=Kp, Vp=Vp, tile_v=tile_v,
        embedding_bf=params["embedding"].astype(bf),
        w1_q=params["w1_q"].astype(bf),
        w1_k=params["w1_k"],                    # used once per sequence (kproj)
        b1=params["b1"],
        w2=params["w2"],
        w_ih_e=params["w_ih_e"].astype(bf),     # (D, 4H)
        w_ih_a=params["w_ih_a"].astype(bf),     # (H, 4H)
        w_hh=params["w_hh"].astype(bf),         # (H, 4H)
        b_lstm=params["b_lstm"],                # (1, 4H)
        w_out=w_out, b_out=b_out,
    )


# -----------------------------------------------------------------------------
# Hoisted (once per source sequence): key projection, batch pad, casts.
# -----------------------------------------------------------------------------
def prepare_encoder(prepped, encoder_outputs, mask):
    B, S, H = encoder_outputs.shape
    Bp = _round_up(B, 8)
    pad_b = Bp - B

    def padb(x):
        return jnp.pad(x, ((0, pad_b),) + ((0, 0),) * (x.ndim - 1))

    # encoder-key projection is constant across decode steps; store in bf16
    # (it is the largest kernel-1 input and only feeds a tanh).
    kproj = (jnp.einsum("bsh,hk->bsk", encoder_outputs, prepped["w1_k"])
             + prepped["b1"][None]).astype(jnp.bfloat16)

    return dict(
        B=B, S=S, Bp=Bp,
        enc=padb(encoder_outputs).astype(jnp.bfloat16),   # (Bp, S, H)
        kproj=padb(kproj),                                # (Bp, S, H)
        mask=padb(mask.astype(jnp.int32)),                # (Bp, S)
    )


# -----------------------------------------------------------------------------
# Per-decode-step wrapper: embedding lookup, batch pad, two pallas_calls.
# -----------------------------------------------------------------------------
def bahdanau_att_decoder_step(input_seqs, last_hidden, enc_state, prepped):
    bf = jnp.bfloat16
    B, Bp = enc_state["B"], enc_state["Bp"]
    D, H, V = prepped["D"], prepped["H"], prepped["V"]
    Kp, Vp, tile_v = prepped["Kp"], prepped["Vp"], prepped["tile_v"]
    pad_b = Bp - B

    def padb(x):
        return jnp.pad(x, ((0, pad_b),) + ((0, 0),) * (x.ndim - 1))

    # embedding + dropout (identity in eval mode); decoder seq_len must be 1
    embed_bf = padb(jnp.take(prepped["embedding_bf"], input_seqs[:, 0], axis=0))
    h0_bf = padb(last_hidden[0][0]).astype(bf)
    c0 = padb(last_hidden[1][0])

    vmem = pl.BlockSpec(memory_space=pltpu.MemorySpace.VMEM)

    # ---------------- kernel 1: attention + LSTM cell ----------------
    k1_in = (embed_bf, h0_bf, c0, enc_state["enc"], enc_state["kproj"],
             enc_state["mask"], prepped["w1_q"], prepped["w2"],
             prepped["w_ih_e"], prepped["w_ih_a"], prepped["w_hh"],
             prepped["b_lstm"])
    k1_bytes = (sum(int(x.size) * x.dtype.itemsize for x in k1_in)
                + Bp * (2 * H * 4 + 2 * H * 2))

    h1, c1, h1_bf, att_bf = pl.pallas_call(
        attention_lstm_kernel,
        out_shape=(jax.ShapeDtypeStruct((Bp, H), jnp.float32),
                   jax.ShapeDtypeStruct((Bp, H), jnp.float32),
                   jax.ShapeDtypeStruct((Bp, H), bf),
                   jax.ShapeDtypeStruct((Bp, H), bf)),
        in_specs=[vmem] * len(k1_in),
        out_specs=(vmem, vmem, vmem, vmem),
        compiler_params=pltpu.CompilerParams(
            vmem_limit_bytes=_vmem_limit(k1_bytes)),
    )(*k1_in)

    # lane-concat of the activations is cheap wrapper-side layout plumbing;
    # zero-pad to Kp so kernel 2 runs one lane-dense K=Kp dot per vocab tile.
    cat_bf = jnp.pad(jnp.concatenate([embed_bf, h1_bf, att_bf], axis=-1),
                     ((0, 0), (0, Kp - (D + 2 * H))))                 # (Bp, Kp)

    # ---------------- kernel 2: vocab-tiled output projection ----------------
    n_tiles = Vp // tile_v
    k2_bytes = (Bp * Kp * 2
                + 2 * (Kp * tile_v * 2 + tile_v * 4 + Bp * tile_v * 4))

    logits_p = pl.pallas_call(
        vocab_proj_kernel,
        out_shape=jax.ShapeDtypeStruct((Bp, Vp), jnp.float32),
        grid=(n_tiles,),
        in_specs=[
            pl.BlockSpec((Bp, Kp), lambda j: (0, 0)),       # cat (replicated)
            pl.BlockSpec((Kp, tile_v), lambda j: (0, j)),   # stacked W_out tile
            pl.BlockSpec((1, tile_v), lambda j: (0, j)),    # b_out tile
        ],
        out_specs=pl.BlockSpec((Bp, tile_v), lambda j: (0, j)),
        compiler_params=pltpu.CompilerParams(
            dimension_semantics=("parallel",),
            vmem_limit_bytes=_vmem_limit(k2_bytes)),
    )(cat_bf, prepped["w_out"], prepped["b_out"])

    logits = logits_p[:B, :V][:, None, :]                    # (B, 1, V)
    hidden = (h1[:B][None, :, :], c1[:B][None, :, :])        # each (1, B, H)
    return logits, hidden


def bahdanau_att_decoder(input_seqs, last_hidden, encoder_outputs, mask, params,
                         tile_v=512):
    """One-shot convenience wrapper (a real decode loop should call
    prepare_params / prepare_encoder once and reuse them across steps)."""
    prepped = prepare_params(params, tile_v=tile_v)
    enc_state = prepare_encoder(prepped, encoder_outputs, mask)
    return bahdanau_att_decoder_step(input_seqs, last_hidden, enc_state, prepped)


# -----------------------------------------------------------------------------
# Pure-JAX reference (mirrors the PyTorch math) for a sanity check.
# -----------------------------------------------------------------------------
def reference_step(input_seqs, last_hidden, encoder_outputs, mask, params):
    B, S, H = encoder_outputs.shape
    embed = jnp.take(params["embedding"], input_seqs[:, 0], axis=0)
    h0, c0 = last_hidden[0][0], last_hidden[1][0]
    enc = encoder_outputs

    q_proj = h0 @ params["w1_q"]
    k_proj = jnp.einsum("bsh,hk->bsk", enc, params["w1_k"])
    e_hid = jnp.tanh(q_proj[:, None, :] + k_proj + params["b1"][None])
    energy = jnp.sum(e_hid * params["w2"][None], axis=-1) + params["b2"][0, 0]
    energy = jnp.where(mask, -1.0e10, energy)
    att_w = jax.nn.softmax(energy, axis=-1)
    att_vec = jnp.einsum("bs,bsh->bh", att_w, enc)

    gates = (embed @ params["w_ih_e"] + att_vec @ params["w_ih_a"]
             + h0 @ params["w_hh"] + params["b_lstm"])
    i_g = jax.nn.sigmoid(gates[:, 0 * H:1 * H])
    f_g = jax.nn.sigmoid(gates[:, 1 * H:2 * H])
    g_g = jnp.tanh(gates[:, 2 * H:3 * H])
    o_g = jax.nn.sigmoid(gates[:, 3 * H:4 * H])
    c1 = f_g * c0 + i_g * g_g
    h1 = o_g * jnp.tanh(c1)

    logits = (embed @ params["w_out_e"] + h1 @ params["w_out_h"]
              + att_vec @ params["w_out_a"] + params["b_out"])
    return logits[:, None, :], (h1[None], c1[None])


# -----------------------------------------------------------------------------
# Deterministic parameter construction (synthetic weights, PyTorch-style init).
# -----------------------------------------------------------------------------
def make_params(vocab_size, word_dim, hidden_dim, key):
    D, H, V = word_dim, hidden_dim, vocab_size
    ks = list(jax.random.split(key, 20))

    def u(k, shape, fan_in):
        bound = 1.0 / np.sqrt(fan_in)
        return jax.random.uniform(k, shape, jnp.float32, -bound, bound)

    initrange = 0.5 / D
    params = {
        # nn.Embedding(vocab, word_dim), uniform(-0.5/D, 0.5/D)
        "embedding": jax.random.uniform(ks[0], (V, D), jnp.float32, -initrange, initrange),
        # AttentionModule 'concat': att_fc_1 Linear(2H, H) split into q / k halves (W^T)
        "w1_q": u(ks[1], (H, H), 2 * H),
        "w1_k": u(ks[2], (H, H), 2 * H),
        "b1":   u(ks[3], (1, H), 2 * H),
        # att_fc_2 Linear(H, 1)
        "w2":   u(ks[4], (1, H), H),
        "b2":   u(ks[5], (1, 1), H),
        # nn.LSTM(word_dim + H, H):  W_ih^T split into embed / att_vec rows
        "w_ih_e": u(ks[6], (D, 4 * H), H),
        "w_ih_a": u(ks[7], (H, 4 * H), H),
        "w_hh":   u(ks[8], (H, 4 * H), H),
        "b_lstm": u(ks[9], (1, 4 * H), H) + u(ks[10], (1, 4 * H), H),
        # decoder_out Linear(3H, V): W^T split into embed / lstm_out / att_vec rows
        "w_out_e": u(ks[11], (D, V), 3 * H),
        "w_out_h": u(ks[12], (H, V), 3 * H),
        "w_out_a": u(ks[13], (H, V), 3 * H),
        "b_out":   u(ks[14], (1, V), 3 * H),
    }
    return params


if __name__ == "__main__":
    # word_dim must equal lstm_hidden_dim (decoder_out is Linear(3H, V)).
    B, S, H, D, V = 2, 8, 32, 32, 500

    key = jax.random.PRNGKey(0)
    k_par, k_tok, k_enc, k_h, k_c = jax.random.split(key, 5)
    params = make_params(V, D, H, k_par)

    input_seqs = jax.random.randint(k_tok, (B, 1), 0, V, dtype=jnp.int32)
    encoder_outputs = 0.5 * jax.random.normal(k_enc, (B, S, H), jnp.float32)
    h0 = 0.5 * jax.random.normal(k_h, (1, B, H), jnp.float32)
    c0 = 0.5 * jax.random.normal(k_c, (1, B, H), jnp.float32)
    last_hidden = (h0, c0)
    lengths = jnp.array([S, 5], dtype=jnp.int32)
    mask = jnp.arange(S)[None, :] >= lengths[:, None]       # (B, S) bool, True = pad

    # Hoisted once (per model / per source sequence); the per-step call only
    # does the embedding lookup, a tiny concat, and the two pallas_calls.
    prepped = prepare_params(params, tile_v=512)
    enc_state = prepare_encoder(prepped, encoder_outputs, mask)
    logits, hidden = bahdanau_att_decoder_step(
        input_seqs, last_hidden, enc_state, prepped)
    jax.block_until_ready((logits, hidden))

    ref_logits, ref_hidden = reference_step(
        input_seqs, last_hidden, encoder_outputs, mask, params)

    assert logits.shape == (B, 1, V)
    assert hidden[0].shape == (1, B, H) and hidden[1].shape == (1, B, H)
    np.testing.assert_allclose(np.asarray(logits), np.asarray(ref_logits),
                               rtol=2e-2, atol=2e-2)
    np.testing.assert_allclose(np.asarray(hidden[0]), np.asarray(ref_hidden[0]),
                               rtol=2e-2, atol=2e-2)
    np.testing.assert_allclose(np.asarray(hidden[1]), np.asarray(ref_hidden[1]),
                               rtol=2e-2, atol=2e-2)

    print("KERNEL_OK")
</pallas_src>

<mosaic_0001>
module attributes {stable_mosaic.version = 11 : i64} {
  func.func @attention_lstm_kernel(%arg0: memref<8x32xbf16, #tpu.memory_space<vmem>>, %arg1: memref<8x32xbf16, #tpu.memory_space<vmem>>, %arg2: memref<8x32xf32, #tpu.memory_space<vmem>>, %arg3: memref<8x8x32xbf16, #tpu.memory_space<vmem>>, %arg4: memref<8x8x32xbf16, #tpu.memory_space<vmem>>, %arg5: memref<8x8xi32, #tpu.memory_space<vmem>>, %arg6: memref<32x32xbf16, #tpu.memory_space<vmem>>, %arg7: memref<1x32xf32, #tpu.memory_space<vmem>>, %arg8: memref<32x128xbf16, #tpu.memory_space<vmem>>, %arg9: memref<32x128xbf16, #tpu.memory_space<vmem>>, %arg10: memref<32x128xbf16, #tpu.memory_space<vmem>>, %arg11: memref<1x128xf32, #tpu.memory_space<vmem>>, %arg12: memref<8x32xf32, #tpu.memory_space<vmem>>, %arg13: memref<8x32xf32, #tpu.memory_space<vmem>>, %arg14: memref<8x32xbf16, #tpu.memory_space<vmem>>, %arg15: memref<8x32xbf16, #tpu.memory_space<vmem>>) attributes {dimension_semantics = [], scalar_prefetch = 0 : i64, scratch_operands = 0 : i64, tpu.core_type = #tpu.core_type<tc>} {
    %c0 = arith.constant 0 : index
    %c0_0 = arith.constant 0 : index
    %0 = vector.load %arg0[%c0, %c0_0] : memref<8x32xbf16, #tpu.memory_space<vmem>>, vector<8x32xbf16>
    %c0_1 = arith.constant 0 : index
    %c0_2 = arith.constant 0 : index
    %1 = vector.load %arg1[%c0_1, %c0_2] : memref<8x32xbf16, #tpu.memory_space<vmem>>, vector<8x32xbf16>
    %c0_3 = arith.constant 0 : index
    %c0_4 = arith.constant 0 : index
    %2 = vector.load %arg2[%c0_3, %c0_4] : memref<8x32xf32, #tpu.memory_space<vmem>>, vector<8x32xf32>
    %c0_5 = arith.constant 0 : index
    %c0_6 = arith.constant 0 : index
    %3 = vector.load %arg6[%c0_5, %c0_6] : memref<32x32xbf16, #tpu.memory_space<vmem>>, vector<32x32xbf16>
    %cst = arith.constant dense<0.000000e+00> : vector<8x32xf32>
    %4 = tpu.matmul %1, %3, %cst {dimension_numbers = #tpu.dot_dimension_numbers<[1], [0], [0], [1], [0, 0, 1, 1], [], []>} : vector<8x32xbf16>, vector<32x32xbf16>, vector<8x32xf32> -> vector<8x32xf32>
    %5 = vector.shape_cast %4 : vector<8x32xf32> to vector<8x1x32xf32>
    %c0_7 = arith.constant 0 : index
    %c0_8 = arith.constant 0 : index
    %c0_9 = arith.constant 0 : index
    %6 = vector.load %arg4[%c0_7, %c0_8, %c0_9] : memref<8x8x32xbf16, #tpu.memory_space<vmem>>, vector<8x8x32xbf16>
    %7 = arith.extf %6 : vector<8x8x32xbf16> to vector<8x8x32xf32>
    %8 = vector.broadcast %5 : vector<8x1x32xf32> to vector<8x8x32xf32>
    %9 = arith.addf %8, %7 : vector<8x8x32xf32>
    %10 = math.tanh %9 : vector<8x8x32xf32>
    %c0_10 = arith.constant 0 : index
    %c0_11 = arith.constant 0 : index
    %11 = vector.load %arg7[%c0_10, %c0_11] : memref<1x32xf32, #tpu.memory_space<vmem>>, vector<1x32xf32>
    %12 = vector.shape_cast %11 : vector<1x32xf32> to vector<1x1x32xf32>
    %13 = vector.broadcast %12 : vector<1x1x32xf32> to vector<8x8x32xf32>
    %14 = arith.mulf %10, %13 : vector<8x8x32xf32>
    %cst_12 = arith.constant dense<0.000000e+00> : vector<8x8xf32>
    %15 = vector.multi_reduction <add>, %14, %cst_12 [2] : vector<8x8x32xf32> to vector<8x8xf32>
    %c0_13 = arith.constant 0 : index
    %c0_14 = arith.constant 0 : index
    %16 = vector.load %arg5[%c0_13, %c0_14] : memref<8x8xi32, #tpu.memory_space<vmem>>, vector<8x8xi32>
    %c0_i32 = arith.constant 0 : i32
    %17 = vector.broadcast %c0_i32 : i32 to vector<8x8xi32>
    %18 = arith.cmpi ne, %16, %17 : vector<8x8xi32>
    %cst_15 = arith.constant -1.000000e+10 : f32
    %19 = vector.broadcast %cst_15 : f32 to vector<8x8xf32>
    %20 = arith.select %18, %19, %15 : vector<8x8xi1>, vector<8x8xf32>
    %cst_16 = arith.constant dense<0xFF800000> : vector<8xf32>
    %21 = vector.multi_reduction <maximumf>, %20, %cst_16 [1] : vector<8x8xf32> to vector<8xf32>
    %22 = vector.shape_cast %21 : vector<8xf32> to vector<8x1xf32>
    %23 = vector.broadcast %22 : vector<8x1xf32> to vector<8x8xf32>
    %24 = arith.subf %20, %23 : vector<8x8xf32>
    %25 = math.exp %24 : vector<8x8xf32>
    %cst_17 = arith.constant dense<0.000000e+00> : vector<8xf32>
    %26 = vector.multi_reduction <add>, %25, %cst_17 [1] : vector<8x8xf32> to vector<8xf32>
    %27 = vector.shape_cast %26 : vector<8xf32> to vector<8x1xf32>
    %28 = tpu.reciprocal %27 {approx = true} : vector<8x1xf32> -> vector<8x1xf32>
    %29 = vector.broadcast %28 : vector<8x1xf32> to vector<8x8xf32>
    %30 = arith.mulf %25, %29 : vector<8x8xf32>
    %c0_18 = arith.constant 0 : index
    %c0_19 = arith.constant 0 : index
    %c0_20 = arith.constant 0 : index
    %31 = vector.load %arg3[%c0_18, %c0_19, %c0_20] : memref<8x8x32xbf16, #tpu.memory_space<vmem>>, vector<8x8x32xbf16>
    %32 = arith.extf %31 : vector<8x8x32xbf16> to vector<8x8x32xf32>
    %cst_21 = arith.constant 0.000000e+00 : f32
    %33 = vector.broadcast %cst_21 : f32 to vector<8x32xf32>
    %34 = vector.extract_strided_slice %30 {offsets = [0, 0], sizes = [8, 1], strides = [1, 1]} : vector<8x8xf32> to vector<8x1xf32>
    %35 = vector.extract_strided_slice %32 {offsets = [0, 0, 0], sizes = [8, 1, 32], strides = [1, 1, 1]} : vector<8x8x32xf32> to vector<8x1x32xf32>
    %36 = vector.shape_cast %35 : vector<8x1x32xf32> to vector<8x32xf32>
    %37 = vector.broadcast %34 : vector<8x1xf32> to vector<8x32xf32>
    %38 = arith.mulf %37, %36 : vector<8x32xf32>
    %39 = arith.addf %33, %38 : vector<8x32xf32>
    %40 = vector.extract_strided_slice %30 {offsets = [0, 1], sizes = [8, 1], strides = [1, 1]} : vector<8x8xf32> to vector<8x1xf32>
    %41 = vector.extract_strided_slice %32 {offsets = [0, 1, 0], sizes = [8, 1, 32], strides = [1, 1, 1]} : vector<8x8x32xf32> to vector<8x1x32xf32>
    %42 = vector.shape_cast %41 : vector<8x1x32xf32> to vector<8x32xf32>
    %43 = vector.broadcast %40 : vector<8x1xf32> to vector<8x32xf32>
    %44 = arith.mulf %43, %42 : vector<8x32xf32>
    %45 = arith.addf %39, %44 : vector<8x32xf32>
    %46 = vector.extract_strided_slice %30 {offsets = [0, 2], sizes = [8, 1], strides = [1, 1]} : vector<8x8xf32> to vector<8x1xf32>
    %47 = vector.extract_strided_slice %32 {offsets = [0, 2, 0], sizes = [8, 1, 32], strides = [1, 1, 1]} : vector<8x8x32xf32> to vector<8x1x32xf32>
    %48 = vector.shape_cast %47 : vector<8x1x32xf32> to vector<8x32xf32>
    %49 = vector.broadcast %46 : vector<8x1xf32> to vector<8x32xf32>
    %50 = arith.mulf %49, %48 : vector<8x32xf32>
    %51 = arith.addf %45, %50 : vector<8x32xf32>
    %52 = vector.extract_strided_slice %30 {offsets = [0, 3], sizes = [8, 1], strides = [1, 1]} : vector<8x8xf32> to vector<8x1xf32>
    %53 = vector.extract_strided_slice %32 {offsets = [0, 3, 0], sizes = [8, 1, 32], strides = [1, 1, 1]} : vector<8x8x32xf32> to vector<8x1x32xf32>
    %54 = vector.shape_cast %53 : vector<8x1x32xf32> to vector<8x32xf32>
    %55 = vector.broadcast %52 : vector<8x1xf32> to vector<8x32xf32>
    %56 = arith.mulf %55, %54 : vector<8x32xf32>
    %57 = arith.addf %51, %56 : vector<8x32xf32>
    %58 = vector.extract_strided_slice %30 {offsets = [0, 4], sizes = [8, 1], strides = [1, 1]} : vector<8x8xf32> to vector<8x1xf32>
    %59 = vector.extract_strided_slice %32 {offsets = [0, 4, 0], sizes = [8, 1, 32], strides = [1, 1, 1]} : vector<8x8x32xf32> to vector<8x1x32xf32>
    %60 = vector.shape_cast %59 : vector<8x1x32xf32> to vector<8x32xf32>
    %61 = vector.broadcast %58 : vector<8x1xf32> to vector<8x32xf32>
    %62 = arith.mulf %61, %60 : vector<8x32xf32>
    %63 = arith.addf %57, %62 : vector<8x32xf32>
    %64 = vector.extract_strided_slice %30 {offsets = [0, 5], sizes = [8, 1], strides = [1, 1]} : vector<8x8xf32> to vector<8x1xf32>
    %65 = vector.extract_strided_slice %32 {offsets = [0, 5, 0], sizes = [8, 1, 32], strides = [1, 1, 1]} : vector<8x8x32xf32> to vector<8x1x32xf32>
    %66 = vector.shape_cast %65 : vector<8x1x32xf32> to vector<8x32xf32>
    %67 = vector.broadcast %64 : vector<8x1xf32> to vector<8x32xf32>
    %68 = arith.mulf %67, %66 : vector<8x32xf32>
    %69 = arith.addf %63, %68 : vector<8x32xf32>
    %70 = vector.extract_strided_slice %30 {offsets = [0, 6], sizes = [8, 1], strides = [1, 1]} : vector<8x8xf32> to vector<8x1xf32>
    %71 = vector.extract_strided_slice %32 {offsets = [0, 6, 0], sizes = [8, 1, 32], strides = [1, 1, 1]} : vector<8x8x32xf32> to vector<8x1x32xf32>
    %72 = vector.shape_cast %71 : vector<8x1x32xf32> to vector<8x32xf32>
    %73 = vector.broadcast %70 : vector<8x1xf32> to vector<8x32xf32>
    %74 = arith.mulf %73, %72 : vector<8x32xf32>
    %75 = arith.addf %69, %74 : vector<8x32xf32>
    %76 = vector.extract_strided_slice %30 {offsets = [0, 7], sizes = [8, 1], strides = [1, 1]} : vector<8x8xf32> to vector<8x1xf32>
    %77 = vector.extract_strided_slice %32 {offsets = [0, 7, 0], sizes = [8, 1, 32], strides = [1, 1, 1]} : vector<8x8x32xf32> to vector<8x1x32xf32>
    %78 = vector.shape_cast %77 : vector<8x1x32xf32> to vector<8x32xf32>
    %79 = vector.broadcast %76 : vector<8x1xf32> to vector<8x32xf32>
    %80 = arith.mulf %79, %78 : vector<8x32xf32>
    %81 = arith.addf %75, %80 : vector<8x32xf32>
    %c0_22 = arith.constant 0 : index
    %c0_23 = arith.constant 0 : index
    %82 = vector.load %arg8[%c0_22, %c0_23] : memref<32x128xbf16, #tpu.memory_space<vmem>>, vector<32x128xbf16>
    %cst_24 = arith.constant dense<0.000000e+00> : vector<8x128xf32>
    %83 = tpu.matmul %0, %82, %cst_24 {dimension_numbers = #tpu.dot_dimension_numbers<[1], [0], [0], [1], [0, 0, 1, 1], [], []>} : vector<8x32xbf16>, vector<32x128xbf16>, vector<8x128xf32> -> vector<8x128xf32>
    %84 = arith.truncf %81 : vector<8x32xf32> to vector<8x32xbf16>
    %c0_25 = arith.constant 0 : index
    %c0_26 = arith.constant 0 : index
    %85 = vector.load %arg9[%c0_25, %c0_26] : memref<32x128xbf16, #tpu.memory_space<vmem>>, vector<32x128xbf16>
    %cst_27 = arith.constant dense<0.000000e+00> : vector<8x128xf32>
    %86 = tpu.matmul %84, %85, %cst_27 {dimension_numbers = #tpu.dot_dimension_numbers<[1], [0], [0], [1], [0, 0, 1, 1], [], []>} : vector<8x32xbf16>, vector<32x128xbf16>, vector<8x128xf32> -> vector<8x128xf32>
    %87 = arith.addf %83, %86 : vector<8x128xf32>
    %c0_28 = arith.constant 0 : index
    %c0_29 = arith.constant 0 : index
    %88 = vector.load %arg10[%c0_28, %c0_29] : memref<32x128xbf16, #tpu.memory_space<vmem>>, vector<32x128xbf16>
    %cst_30 = arith.constant dense<0.000000e+00> : vector<8x128xf32>
    %89 = tpu.matmul %1, %88, %cst_30 {dimension_numbers = #tpu.dot_dimension_numbers<[1], [0], [0], [1], [0, 0, 1, 1], [], []>} : vector<8x32xbf16>, vector<32x128xbf16>, vector<8x128xf32> -> vector<8x128xf32>
    %90 = arith.addf %87, %89 : vector<8x128xf32>
    %c0_31 = arith.constant 0 : index
    %c0_32 = arith.constant 0 : index
    %91 = vector.load %arg11[%c0_31, %c0_32] : memref<1x128xf32, #tpu.memory_space<vmem>>, vector<1x128xf32>
    %92 = vector.broadcast %91 : vector<1x128xf32> to vector<8x128xf32>
    %93 = arith.addf %90, %92 : vector<8x128xf32>
    %94 = vector.extract_strided_slice %93 {offsets = [0, 0], sizes = [8, 32], strides = [1, 1]} : vector<8x128xf32> to vector<8x32xf32>
    %95 = arith.negf %94 : vector<8x32xf32>
    %96 = math.exp %95 : vector<8x32xf32>
    %cst_33 = arith.constant 1.000000e+00 : f32
    %97 = vector.broadcast %cst_33 : f32 to vector<8x32xf32>
    %98 = arith.addf %97, %96 : vector<8x32xf32>
    %99 = arith.divf %97, %98 : vector<8x32xf32>
    %100 = vector.extract_strided_slice %93 {offsets = [0, 32], sizes = [8, 32], strides = [1, 1]} : vector<8x128xf32> to vector<8x32xf32>
    %101 = arith.negf %100 : vector<8x32xf32>
    %102 = math.exp %101 : vector<8x32xf32>
    %cst_34 = arith.constant 1.000000e+00 : f32
    %103 = vector.broadcast %cst_34 : f32 to vector<8x32xf32>
    %104 = arith.addf %103, %102 : vector<8x32xf32>
    %105 = arith.divf %103, %104 : vector<8x32xf32>
    %106 = vector.extract_strided_slice %93 {offsets = [0, 64], sizes = [8, 32], strides = [1, 1]} : vector<8x128xf32> to vector<8x32xf32>
    %107 = math.tanh %106 : vector<8x32xf32>
    %108 = vector.extract_strided_slice %93 {offsets = [0, 96], sizes = [8, 32], strides = [1, 1]} : vector<8x128xf32> to vector<8x32xf32>
    %109 = arith.negf %108 : vector<8x32xf32>
    %110 = math.exp %109 : vector<8x32xf32>
    %cst_35 = arith.constant 1.000000e+00 : f32
    %111 = vector.broadcast %cst_35 : f32 to vector<8x32xf32>
    %112 = arith.addf %111, %110 : vector<8x32xf32>
    %113 = arith.divf %111, %112 : vector<8x32xf32>
    %114 = arith.mulf %105, %2 : vector<8x32xf32>
    %115 = arith.mulf %99, %107 : vector<8x32xf32>
    %116 = arith.addf %114, %115 : vector<8x32xf32>
    %117 = math.tanh %116 : vector<8x32xf32>
    %118 = arith.mulf %113, %117 : vector<8x32xf32>
    %c0_36 = arith.constant 0 : index
    %c0_37 = arith.constant 0 : index
    %119 = vector.load %arg12[%c0_36, %c0_37] : memref<8x32xf32, #tpu.memory_space<vmem>>, vector<8x32xf32>
    tpu.vector_store %arg12[%c0_36, %c0_37], %118 {strides = array<i32>} : memref<8x32xf32, #tpu.memory_space<vmem>>, vector<8x32xf32>,
    %c0_38 = arith.constant 0 : index
    %c0_39 = arith.constant 0 : index
    %120 = vector.load %arg13[%c0_38, %c0_39] : memref<8x32xf32, #tpu.memory_space<vmem>>, vector<8x32xf32>
    tpu.vector_store %arg13[%c0_38, %c0_39], %116 {strides = array<i32>} : memref<8x32xf32, #tpu.memory_space<vmem>>, vector<8x32xf32>,
    %121 = arith.truncf %118 : vector<8x32xf32> to vector<8x32xbf16>
    %c0_40 = arith.constant 0 : index
    %c0_41 = arith.constant 0 : index
    %122 = vector.load %arg14[%c0_40, %c0_41] : memref<8x32xbf16, #tpu.memory_space<vmem>>, vector<8x32xbf16>
    tpu.vector_store %arg14[%c0_40, %c0_41], %121 {strides = array<i32>} : memref<8x32xbf16, #tpu.memory_space<vmem>>, vector<8x32xbf16>,
    %123 = arith.truncf %81 : vector<8x32xf32> to vector<8x32xbf16>
    %c0_42 = arith.constant 0 : index
    %c0_43 = arith.constant 0 : index
    %124 = vector.load %arg15[%c0_42, %c0_43] : memref<8x32xbf16, #tpu.memory_space<vmem>>, vector<8x32xbf16>
    tpu.vector_store %arg15[%c0_42, %c0_43], %123 {strides = array<i32>} : memref<8x32xbf16, #tpu.memory_space<vmem>>, vector<8x32xbf16>,
    return
  }
}

</mosaic_0001>

<llo_original>
// kernel: tpu_custom_call.1
$region0: #{tpu_custom_call.1}
  #allocation0 [shape = 'u32[]', space=smem, size = 0x4, offset = 0x4, fixed_abs, tag = 'smem constant byte address 0x4 - core index']
  #allocation1 [shape = 'u32[72,128]{1,0:T(1,128)}', space=vmem, size = 0x9000, scoped, tag = 'internal scratch']
  %s0 = inlined_call_operand.hbm [shape: bf16[8,32], index: 0, kind: input, shape index: {}]
  %s1 = inlined_call_operand.hbm [shape: bf16[8,32], index: 1, kind: input, shape index: {}]
  %s2 = inlined_call_operand.hbm [shape: f32[8,32], index: 2, kind: input, shape index: {}]
  %s3 = inlined_call_operand.hbm [shape: bf16[8,8,32], index: 3, kind: input, shape index: {}]
  %s4 = inlined_call_operand.hbm [shape: bf16[8,8,32], index: 4, kind: input, shape index: {}]
  %s5 = inlined_call_operand.hbm [shape: s32[8,8], index: 5, kind: input, shape index: {}]
  %s6 = inlined_call_operand.hbm [shape: bf16[32,32], index: 6, kind: input, shape index: {}]
  %s7 = inlined_call_operand.vmem [shape: f32[1,32], index: 7, kind: input, shape index: {}]
  %s8 = inlined_call_operand.hbm [shape: bf16[32,128], index: 8, kind: input, shape index: {}]
  %s9 = inlined_call_operand.hbm [shape: bf16[32,128], index: 9, kind: input, shape index: {}]
  %s10 = inlined_call_operand.hbm [shape: bf16[32,128], index: 10, kind: input, shape index: {}]
  %s11 = inlined_call_operand.vmem [shape: f32[1,128], index: 11, kind: input, shape index: {}]
  %s12 = inlined_call_operand.hbm [shape: f32[8,32], index: 12, kind: output, shape index: {0}]
  %s13 = inlined_call_operand.hbm [shape: f32[8,32], index: 13, kind: output, shape index: {1}]
  %s14 = inlined_call_operand.hbm [shape: bf16[8,32], index: 14, kind: output, shape index: {2}]
  %s15 = inlined_call_operand.hbm [shape: bf16[8,32], index: 15, kind: output, shape index: {3}]
  %16 = xla_tuple %s12, %s13, %s14, %s15
  %s17 = sld [smem:[#allocation0]]
  $region122: #{tpu_custom_call.1} parent=0
    _
  %s19 = ssub.s32 1, %s17
  %s20 = scalar_select 0, %s19, %s17
  $region1: #{tpu_custom_call.1} parent=0
    #allocation2 [shape = 'u8[2048]{0}', space=vmem, size = 0x800, scoped, tag = 'input window, operand 0, single buffered']
    #allocation3 [shape = 's32[1]{0}', space=sflag, size = 0x4, scoped, tag = 'scoped memory for tpu_custom_call.1']
    #allocation4 [shape = 's32[1]{0}', space=sflag, size = 0x4, scoped, tag = 'scoped memory for tpu_custom_call.1']
    #allocation5 [shape = 'u8[2048]{0}', space=vmem, size = 0x800, scoped, tag = 'input window, operand 1, single buffered']
    #allocation6 [shape = 's32[1]{0}', space=sflag, size = 0x4, scoped, tag = 'scoped memory for tpu_custom_call.1']
    #allocation7 [shape = 'u8[4096]{0}', space=vmem, size = 0x1000, scoped, tag = 'input window, operand 2, single buffered']
    #allocation8 [shape = 'u8[16384]{0}', space=vmem, size = 0x4000, scoped, tag = 'input window, operand 3, single buffered']
    #allocation9 [shape = 's32[1]{0}', space=sflag, size = 0x4, scoped, tag = 'scoped memory for tpu_custom_call.1']
    #allocation10 [shape = 'u8[16384]{0}', space=vmem, size = 0x4000, scoped, tag = 'input window, operand 4, single buffered']
    #allocation11 [shape = 'u8[4096]{0}', space=vmem, size = 0x1000, scoped, tag = 'input window, operand 5, single buffered']
    #allocation12 [shape = 's32[1]{0}', space=sflag, size = 0x4, scoped, tag = 'scoped memory for tpu_custom_call.1']
    #allocation13 [shape = 'u8[8192]{0}', space=vmem, size = 0x2000, scoped, tag = 'input window, operand 6, single buffered']
    #allocation14 [shape = 'u8[8192]{0}', space=vmem, size = 0x2000, scoped, tag = 'input window, operand 8, single buffered']
    #allocation15 [shape = 's32[1]{0}', space=sflag, size = 0x4, scoped, tag = 'scoped memory for tpu_custom_call.1']
    #allocation16 [shape = 'u8[8192]{0}', space=vmem, size = 0x2000, scoped, tag = 'input window, operand 9, single buffered']
    #allocation17 [shape = 'u8[8192]{0}', space=vmem, size = 0x2000, scoped, tag = 'input window, operand 10, single buffered']
    #allocation18 [shape = 's32[1]{0}', space=sflag, size = 0x4, scoped, tag = 'scoped memory for tpu_custom_call.1']
    #allocation19 [shape = 'u8[4096]{0}', space=vmem, size = 0x1000, scoped, tag = 'output window, operand 0, single buffered']
    #allocation20 [shape = 'u8[4096]{0}', space=vmem, size = 0x1000, scoped, tag = 'output window, operand 1, single buffered']
    #allocation21 [shape = 's32[1]{0}', space=sflag, size = 0x4, scoped, tag = 'scoped memory for tpu_custom_call.1']
    #allocation22 [shape = 'u8[2048]{0}', space=vmem, size = 0x800, scoped, tag = 'output window, operand 2, single buffered']
    #allocation23 [shape = 'u8[2048]{0}', space=vmem, size = 0x800, scoped, tag = 'output window, operand 3, single buffered']
    #allocation24 [shape = 's32[1]{0}', space=sflag, size = 0x4, scoped, tag = 'scoped memory for tpu_custom_call.1']
    %21 = vsyncpa [#allocation3], 0
    %22 = vsyncpa [#allocation6], 0
    %23 = vsyncpa [#allocation9], 0
    %24 = vsyncpa [#allocation12], 0
    %25 = vsyncpa [#allocation15], 0
    %26 = vsyncpa [#allocation18], 0
    %27 = vsyncpa [#allocation4], 0
    %28 = vsyncpa [#allocation21], 0
    %29 = vsyncpa [#allocation24], 0
    // Predicated region
    $region2: #{tpu_custom_call.1} parent=1 // pred_check
      _
    $region3: #{tpu_custom_call.1} parent=1 // pred_check_branch
      %31 = sbr.rel (0) target = $region5
    $region4: #{tpu_custom_call.1} parent=1 // pred_region
      %33 = vsyncadd [#allocation3], 0
      %s35 = sshll.u32 %s0, 4
      %s36 = int_to_ptr.hbm [resolvable:$true] %s35
      %s37 = sshll.u32 [#allocation2], 4
      %s38 = int_to_ptr.vmem [resolvable:$true] %s37
      %40 = dma.hbm_to_vmem [thread:$0]  %s36, 64, %s38, [#allocation3]
    $region5: #{tpu_custom_call.1} parent=1 // pred_fallthru
      _
    // Predicated region
    $region6: #{tpu_custom_call.1} parent=1 // pred_check
      _
    $region7: #{tpu_custom_call.1} parent=1 // pred_check_branch
      %42 = sbr.rel (0) target = $region9
    $region8: #{tpu_custom_call.1} parent=1 // pred_region
      %44 = vsyncadd [#allocation6], 0
      %s46 = sshll.u32 %s1, 4
      %s47 = int_to_ptr.hbm [resolvable:$true] %s46
      %s48 = sshll.u32 [#allocation5], 4
      %s49 = int_to_ptr.vmem [resolvable:$true] %s48
      %51 = dma.hbm_to_vmem [thread:$0]  %s47, 64, %s49, [#allocation6]
    $region9: #{tpu_custom_call.1} parent=1 // pred_fallthru
      _
    // Predicated region
    $region10: #{tpu_custom_call.1} parent=1 // pred_check
      _
    $region11: #{tpu_custom_call.1} parent=1 // pred_check_branch
      %53 = sbr.rel (0) target = $region13
    $region12: #{tpu_custom_call.1} parent=1 // pred_region
      %55 = vsyncadd [#allocation6], 0
      %s57 = sshll.u32 %s2, 4
      %s58 = int_to_ptr.hbm [resolvable:$true] %s57
      %s59 = sshll.u32 [#allocation7], 4
      %s60 = int_to_ptr.vmem [resolvable:$true] %s59
      %62 = dma.hbm_to_vmem [thread:$0]  %s58, 128, %s60, [#allocation6]
    $region13: #{tpu_custom_call.1} parent=1 // pred_fallthru
      _
    // Predicated region
    $region14: #{tpu_custom_call.1} parent=1 // pred_check
      _
    $region15: #{tpu_custom_call.1} parent=1 // pred_check_branch
      %64 = sbr.rel (0) target = $region17
    $region16: #{tpu_custom_call.1} parent=1 // pred_region
      %66 = vsyncadd [#allocation9], 0
      %s67 = sshll.u32 %s3, 4
      %s68 = int_to_ptr.hbm [resolvable:$true] %s67
      %s69 = sshll.u32 [#allocation8], 4
      %s70 = int_to_ptr.vmem [resolvable:$true] %s69
      %75 = dma.hbm_to_vmem [thread:$0]  %s68, 512, %s70, [#allocation9], 64, 64, 4
    $region17: #{tpu_custom_call.1} parent=1 // pred_fallthru
      _
    // Predicated region
    $region18: #{tpu_custom_call.1} parent=1 // pred_check
      _
    $region19: #{tpu_custom_call.1} parent=1 // pred_check_branch
      %77 = sbr.rel (0) target = $region21
    $region20: #{tpu_custom_call.1} parent=1 // pred_region
      %79 = vsyncadd [#allocation9], 0
      %s80 = sshll.u32 %s4, 4
      %s81 = int_to_ptr.hbm [resolvable:$true] %s80
      %s82 = sshll.u32 [#allocation10], 4
      %s83 = int_to_ptr.vmem [resolvable:$true] %s82
      %88 = dma.hbm_to_vmem [thread:$0]  %s81, 512, %s83, [#allocation9], 64, 64, 4
    $region21: #{tpu_custom_call.1} parent=1 // pred_fallthru
      _
    // Predicated region
    $region22: #{tpu_custom_call.1} parent=1 // pred_check
      _
    $region23: #{tpu_custom_call.1} parent=1 // pred_check_branch
      %90 = sbr.rel (0) target = $region25
    $region24: #{tpu_custom_call.1} parent=1 // pred_region
      %92 = vsyncadd [#allocation12], 0
      %s94 = sshll.u32 %s5, 4
      %s95 = int_to_ptr.hbm [resolvable:$true] %s94
      %s96 = sshll.u32 [#allocation11], 4
      %s97 = int_to_ptr.vmem [resolvable:$true] %s96
      %99 = dma.hbm_to_vmem [thread:$0]  %s95, 128, %s97, [#allocation12]
    $region25: #{tpu_custom_call.1} parent=1 // pred_fallthru
      _
    // Predicated region
    $region26: #{tpu_custom_call.1} parent=1 // pred_check
      _
    $region27: #{tpu_custom_call.1} parent=1 // pred_check_branch
      %101 = sbr.rel (0) target = $region29
    $region28: #{tpu_custom_call.1} parent=1 // pred_region
      %103 = vsyncadd [#allocation12], 0
      %s104 = sshll.u32 %s6, 4
      %s105 = int_to_ptr.hbm [resolvable:$true] %s104
      %s106 = sshll.u32 [#allocation13], 4
      %s107 = int_to_ptr.vmem [resolvable:$true] %s106
      %112 = dma.hbm_to_vmem [thread:$0]  %s105, 256, %s107, [#allocation12], 64, 64, 4
    $region29: #{tpu_custom_call.1} parent=1 // pred_fallthru
      _
    // Predicated region
    $region30: #{tpu_custom_call.1} parent=1 // pred_check
      _
    $region31: #{tpu_custom_call.1} parent=1 // pred_check_branch
      %114 = sbr.rel (0) target = $region33
    $region32: #{tpu_custom_call.1} parent=1 // pred_region
      _
    $region33: #{tpu_custom_call.1} parent=1 // pred_fallthru
      _
    // Predicated region
    $region34: #{tpu_custom_call.1} parent=1 // pred_check
      _
    $region35: #{tpu_custom_call.1} parent=1 // pred_check_branch
      %116 = sbr.rel (0) target = $region37
    $region36: #{tpu_custom_call.1} parent=1 // pred_region
      %118 = vsyncadd [#allocation15], 0
      %s119 = sshll.u32 %s8, 4
      %s120 = int_to_ptr.hbm [resolvable:$true] %s119
      %s121 = sshll.u32 [#allocation14], 4
      %s122 = int_to_ptr.vmem [resolvable:$true] %s121
      %127 = dma.hbm_to_vmem [thread:$0]  %s120, 256, %s122, [#allocation15], 64, 64, 4
    $region37: #{tpu_custom_call.1} parent=1 // pred_fallthru
      _
    // Predicated region
    $region38: #{tpu_custom_call.1} parent=1 // pred_check
      _
    $region39: #{tpu_custom_call.1} parent=1 // pred_check_branch
      %129 = sbr.rel (0) target = $region41
    $region40: #{tpu_custom_call.1} parent=1 // pred_region
      %131 = vsyncadd [#allocation15], 0
      %s132 = sshll.u32 %s9, 4
      %s133 = int_to_ptr.hbm [resolvable:$true] %s132
      %s134 = sshll.u32 [#allocation16], 4
      %s135 = int_to_ptr.vmem [resolvable:$true] %s134
      %140 = dma.hbm_to_vmem [thread:$0]  %s133, 256, %s135, [#allocation15], 64, 64, 4
    $region41: #{tpu_custom_call.1} parent=1 // pred_fallthru
      _
    // Predicated region
    $region42: #{tpu_custom_call.1} parent=1 // pred_check
      _
    $region43: #{tpu_custom_call.1} parent=1 // pred_check_branch
      %142 = sbr.rel (0) target = $region45
    $region44: #{tpu_custom_call.1} parent=1 // pred_region
      %144 = vsyncadd [#allocation18], 0
      %s145 = sshll.u32 %s10, 4
      %s146 = int_to_ptr.hbm [resolvable:$true] %s145
      %s147 = sshll.u32 [#allocation17], 4
      %s148 = int_to_ptr.vmem [resolvable:$true] %s147
      %153 = dma.hbm_to_vmem [thread:$0]  %s146, 256, %s148, [#allocation18], 64, 64, 4
    $region45: #{tpu_custom_call.1} parent=1 // pred_fallthru
      _
    // Predicated region
    $region46: #{tpu_custom_call.1} parent=1 // pred_check
      _
    $region47: #{tpu_custom_call.1} parent=1 // pred_check_branch
      %155 = sbr.rel (0) target = $region49
    $region48: #{tpu_custom_call.1} parent=1 // pred_region
      _
    $region49: #{tpu_custom_call.1} parent=1 // pred_fallthru
      _
    // Predicated region
    $region50: #{tpu_custom_call.1} parent=1 // pred_check
      _
    $region51: #{tpu_custom_call.1} parent=1 // pred_check_branch
      %157 = sbr.rel (0) target = $region53
    $region52: #{tpu_custom_call.1} parent=1 // pred_region
      %159 = dma.done [#allocation3], 64
    $region53: #{tpu_custom_call.1} parent=1 // pred_fallthru
      _
    // Predicated region
    $region54: #{tpu_custom_call.1} parent=1 // pred_check
      _
    $region55: #{tpu_custom_call.1} parent=1 // pred_check_branch
      %161 = sbr.rel (0) target = $region57
    $region56: #{tpu_custom_call.1} parent=1 // pred_region
      %163 = dma.done [#allocation6], 64
    $region57: #{tpu_custom_call.1} parent=1 // pred_fallthru
      _
    // Predicated region
    $region58: #{tpu_custom_call.1} parent=1 // pred_check
      _
    $region59: #{tpu_custom_call.1} parent=1 // pred_check_branch
      %165 = sbr.rel (0) target = $region61
    $region60: #{tpu_custom_call.1} parent=1 // pred_region
      %167 = dma.done [#allocation6], 128
    $region61: #{tpu_custom_call.1} parent=1 // pred_fallthru
      _
    // Predicated region
    $region62: #{tpu_custom_call.1} parent=1 // pred_check
      _
    $region63: #{tpu_custom_call.1} parent=1 // pred_check_branch
      %169 = sbr.rel (0) target = $region65
    $region64: #{tpu_custom_call.1} parent=1 // pred_region
      %171 = dma.done [#allocation9], 512
    $region65: #{tpu_custom_call.1} parent=1 // pred_fallthru
      _
    // Predicated region
    $region66: #{tpu_custom_call.1} parent=1 // pred_check
      _
    $region67: #{tpu_custom_call.1} parent=1 // pred_check_branch
      %173 = sbr.rel (0) target = $region69
    $region68: #{tpu_custom_call.1} parent=1 // pred_region
      %175 = dma.done [#allocation9], 512
    $region69: #{tpu_custom_call.1} parent=1 // pred_fallthru
      _
    // Predicated region
    $region70: #{tpu_custom_call.1} parent=1 // pred_check
      _
    $region71: #{tpu_custom_call.1} parent=1 // pred_check_branch
      %177 = sbr.rel (0) target = $region73
    $region72: #{tpu_custom_call.1} parent=1 // pred_region
      %179 = dma.done [#allocation12], 128
    $region73: #{tpu_custom_call.1} parent=1 // pred_fallthru
      _
    // Predicated region
    $region74: #{tpu_custom_call.1} parent=1 // pred_check
      _
    $region75: #{tpu_custom_call.1} parent=1 // pred_check_branch
      %181 = sbr.rel (0) target = $region77
    $region76: #{tpu_custom_call.1} parent=1 // pred_region
      %183 = dma.done [#allocation12], 256
    $region77: #{tpu_custom_call.1} parent=1 // pred_fallthru
      _
    // Predicated region
    $region78: #{tpu_custom_call.1} parent=1 // pred_check
      _
    $region79: #{tpu_custom_call.1} parent=1 // pred_check_branch
      %185 = sbr.rel (0) target = $region81
    $region80: #{tpu_custom_call.1} parent=1 // pred_region
      %187 = dma.done [#allocation15], 256
    $region81: #{tpu_custom_call.1} parent=1 // pred_fallthru
      _
    // Predicated region
    $region82: #{tpu_custom_call.1} parent=1 // pred_check
      _
    $region83: #{tpu_custom_call.1} parent=1 // pred_check_branch
      %189 = sbr.rel (0) target = $region85
    $region84: #{tpu_custom_call.1} parent=1 // pred_region
      %191 = dma.done [#allocation15], 256
    $region85: #{tpu_custom_call.1} parent=1 // pred_fallthru
      _
    // Predicated region
    $region86: #{tpu_custom_call.1} parent=1 // pred_check
      _
    $region87: #{tpu_custom_call.1} parent=1 // pred_check_branch
      %193 = sbr.rel (0) target = $region89
    $region88: #{tpu_custom_call.1} parent=1 // pred_region
      %195 = dma.done [#allocation18], 256
    $region89: #{tpu_custom_call.1} parent=1 // pred_fallthru
      _
    %v197 = vld [vmem:[#allocation2] sm:$0xf]
    %v198 = vld [vmem:[#allocation5] sm:$0xf]
    %v199 = vld [vmem:[#allocation7] sm:$0xff]
    %v200 = vld [vmem:[#allocation13] sm:$0xf]
    %v201 = vld [vmem:[#allocation13 + $0x4] sm:$0xf]
    %v202 = vld [vmem:[#allocation13 + $0x8] sm:$0xf]
    %v203 = vld [vmem:[#allocation13 + $0xc] sm:$0xf]
    %v208 = vunpack.c.l.b16 %v200
    %v209 = vunpack.c.l.b16 %v201
    %v210 = vunpack.c.l.b16 %v202
    %v211 = vunpack.c.l.b16 %v203
    %v212 = vpack.c.b16 %v209, %v208
    %v213 = vpack.c.b16 %v211, %v210
    %vm216 = vcmask 261120
    %v218 = vsel %vm216, %v198, 0
    %220 = vmatpush.bf16.msra.mxu0 0
    %221 = vmatpush.bf16.msra.mxu0 0
    %222 = vmatpush.bf16.msra.mxu0 0
    %223 = vmatpush.bf16.msra.mxu0 0
    %224 = vmatpush.bf16.msra.mxu0 0
    %225 = vmatpush.bf16.msra.mxu0 0
    %226 = vmatpush.bf16.msra.mxu0 %v213
    %227 = vmatpush.bf16.msra.mxu0 %v212
    %228 = vmatmul.bf16.gmra.mxu0 %v218
    %v229 = vpop.f32.mrf.mxu0
    %v230 = vadd.f32 0.0, %v229
    %v231 = vpop.f32.mrf.mxu0
    %232 = vdwg.mxu0
    %v234 = vrot.slane %v230, 1
    %v235 = vrot.slane %v230, 2
    %v236 = vrot.slane %v230, 3
    %v237 = vrot.slane %v230, 4
    %v238 = vrot.slane %v230, 5
    %v239 = vrot.slane %v230, 6
    %v240 = vrot.slane %v230, 7
    %v241 = vld [vmem:[#allocation10] sm:$0xf]
    %v242 = vld [vmem:[#allocation10 + $0x4] sm:$0xf]
    %v243 = vld [vmem:[#allocation10 + $0x8] sm:$0xf]
    %v244 = vld [vmem:[#allocation10 + $0xc] sm:$0xf]
    %v245 = vld [vmem:[#allocation10 + $0x10] sm:$0xf]
    %v246 = vld [vmem:[#allocation10 + $0x14] sm:$0xf]
    %v247 = vld [vmem:[#allocation10 + $0x18] sm:$0xf]
    %v248 = vld [vmem:[#allocation10 + $0x1c] sm:$0xf]
    %v249 = vunpack.c.l.bf16 %v241
    %v250 = vunpack.c.l.bf16 %v242
    %v251 = vunpack.c.l.bf16 %v243
    %v252 = vunpack.c.l.bf16 %v244
    %v253 = vunpack.c.l.bf16 %v245
    %v254 = vunpack.c.l.bf16 %v246
    %v255 = vunpack.c.l.bf16 %v247
    %v256 = vunpack.c.l.bf16 %v248
    %v257 = vperm.slane %v230, 0
    %v258 = vperm.slane %v234, 0
    %v259 = vperm.slane %v235, 0
    %v260 = vperm.slane %v236, 0
    %v261 = vperm.slane %v237, 0
    %v262 = vperm.slane %v238, 0
    %v263 = vperm.slane %v239, 0
    %v264 = vperm.slane %v240, 0
    %v273 = vadd.f32 %v257, %v249
    %v274 = vadd.f32 %v258, %v250
    %v275 = vadd.f32 %v259, %v251
    %v276 = vadd.f32 %v260, %v252
    %v277 = vadd.f32 %v261, %v253
    %v278 = vadd.f32 %v262, %v254
    %v279 = vadd.f32 %v263, %v255
    %v280 = vadd.f32 %v264, %v256
    %v281 = vtanh.pop %v273
    %v282 = vtanh.pop %v274
    %v283 = vtanh.pop %v275
    %v284 = vtanh.pop %v276
    %v285 = vtanh.pop %v277
    %v286 = vtanh.pop %v278
    %v287 = vtanh.pop %v279
    %v288 = vtanh.pop %v280
    %v289 = vld [vmem:[%s7] sm:$0x1]
    %v291 = vperm.slane %v289, 0
    %v293 = vmul.f32 %v281, %v291
    %v294 = vmul.f32 %v282, %v291
    %v295 = vmul.f32 %v283, %v291
    %v296 = vmul.f32 %v284, %v291
    %v297 = vmul.f32 %v285, %v291
    %v298 = vmul.f32 %v286, %v291
    %v299 = vmul.f32 %v287, %v291
    %v300 = vmul.f32 %v288, %v291
    %v301 = vsel %vm216, %v293, 0.0
    %302 = vadd.xlane.f32.xlu0 %v301
    %v303 = vpop.xlane.xlu0 %302
    %v304 = vsel %vm216, %v294, 0.0
    %305 = vadd.xlane.f32.xlu0 %v304
    %v306 = vpop.xlane.xlu0 %305
    %v307 = vsel %vm216, %v295, 0.0
    %308 = vadd.xlane.f32.xlu0 %v307
    %v309 = vpop.xlane.xlu0 %308
    %v310 = vsel %vm216, %v296, 0.0
    %311 = vadd.xlane.f32.xlu0 %v310
    %v312 = vpop.xlane.xlu0 %311
    %v313 = vsel %vm216, %v297, 0.0
    %314 = vadd.xlane.f32.xlu0 %v313
    %v315 = vpop.xlane.xlu0 %314
    %v316 = vsel %vm216, %v298, 0.0
    %317 = vadd.xlane.f32.xlu0 %v316
    %v318 = vpop.xlane.xlu0 %317
    %v319 = vsel %vm216, %v299, 0.0
    %320 = vadd.xlane.f32.xlu0 %v319
    %v321 = vpop.xlane.xlu0 %320
    %v322 = vsel %vm216, %v300, 0.0
    %323 = vadd.xlane.f32.xlu0 %v322
    %v324 = vpop.xlane.xlu0 %323
    %v325 = vld [vmem:[#allocation11] sm:$0xff]
    %vm326 = vcmp.ne.s32.totalorder %v325, 0
    %v335 = vlaneseq
    %v336 = vand.u32 %v335, 127
    %v337 = vperm.slane %v303, %v336
    %v338 = vperm.slane %v306, %v336
    %v339 = vperm.slane %v309, %v336
    %v340 = vperm.slane %v312, %v336
    %v341 = vperm.slane %v315, %v336
    %v342 = vperm.slane %v318, %v336
    %v343 = vperm.slane %v321, %v336
    %v344 = vperm.slane %v324, %v336
    %vm345 = vcmask 1041409
    %v346 = vsel %vm345, %v338, %v337
    %vm347 = vcmask 1042434
    %v348 = vsel %vm347, %v339, %v346
    %vm349 = vcmask 1043459
    %v350 = vsel %vm349, %v340, %v348
    %vm351 = vcmask 1044484
    %v352 = vsel %vm351, %v341, %v350
    %vm353 = vcmask 1045509
    %v354 = vsel %vm353, %v342, %v352
    %vm355 = vcmask 1046534
    %v356 = vsel %vm355, %v343, %v354
    %vm357 = vcmask 1047559
    %v358 = vsel %vm357, %v344, %v356
    %v360 = vsel %vm326, -1e+10, %v358
    %vm361 = vcmask 64512
    %v362 = vsel %vm361, %v360, -inf
    %363 = vmax.xlane.f32.xlu0 %v362
    %v364 = vpop.xlane.xlu0 %363
    %v365 = vsub.f32 %v360, %v364
    %v366 = vmul.f32 %v365, 1.442695
    %v367 = vpow.pop %v366
    %v368 = vsel %vm361, %v367, 0.0
    %369 = vadd.xlane.f32.xlu0 %v368
    %v370 = vpop.xlane.xlu0 %369
    %v371 = vrcp.pop %v370
    %v372 = vmul.f32 %v367, %v371
    %v373 = vld [vmem:[#allocation8] sm:$0xf]
    %v374 = vld [vmem:[#allocation8 + $0x4] sm:$0xf]
    %v375 = vld [vmem:[#allocation8 + $0x8] sm:$0xf]
    %v376 = vld [vmem:[#allocation8 + $0xc] sm:$0xf]
    %v377 = vld [vmem:[#allocation8 + $0x10] sm:$0xf]
    %v378 = vld [vmem:[#allocation8 + $0x14] sm:$0xf]
    %v379 = vld [vmem:[#allocation8 + $0x18] sm:$0xf]
    %v380 = vld [vmem:[#allocation8 + $0x1c] sm:$0xf]
    %v381 = vunpack.c.l.bf16 %v373
    %v382 = vunpack.c.l.bf16 %v374
    %v383 = vunpack.c.l.bf16 %v375
    %v384 = vunpack.c.l.bf16 %v376
    %v385 = vunpack.c.l.bf16 %v377
    %v386 = vunpack.c.l.bf16 %v378
    %v387 = vunpack.c.l.bf16 %v379
    %v388 = vunpack.c.l.bf16 %v380
    %390 = vset.pattern.permute.xlu0 0
    %391 = vperm.xlu0 %390, %v372
    %v392 = vpop.permute.xlu0 %391
    %v402 = vrot.slane %v382, 7
    %v403 = vsel %vm345, %v402, %v381
    %v404 = vrot.slane %v383, 6
    %v405 = vsel %vm347, %v404, %v403
    %v406 = vrot.slane %v384, 5
    %v407 = vsel %vm349, %v406, %v405
    %v408 = vrot.slane %v385, 4
    %v409 = vsel %vm351, %v408, %v407
    %v410 = vrot.slane %v386, 3
    %v411 = vsel %vm353, %v410, %v409
    %v412 = vrot.slane %v387, 2
    %v413 = vsel %vm355, %v412, %v411
    %v414 = vrot.slane %v388, 1
    %v415 = vsel %vm357, %v414, %v413
    %v417 = vmul.f32 %v392, %v415
    %v418 = vadd.f32 %v417, 0.0
    %419 = vset.pattern.permute.xlu0 1
    %420 = vperm.xlu0 %419, %v372
    %v421 = vpop.permute.xlu0 %420
    %v423 = vrot.slane %v381, 1
    %v424 = vsel %vm345, %v382, %v423
    %v425 = vrot.slane %v383, 7
    %v426 = vsel %vm347, %v425, %v424
    %v427 = vrot.slane %v384, 6
    %v428 = vsel %vm349, %v427, %v426
    %v429 = vrot.slane %v385, 5
    %v430 = vsel %vm351, %v429, %v428
    %v431 = vrot.slane %v386, 4
    %v432 = vsel %vm353, %v431, %v430
    %v433 = vrot.slane %v387, 3
    %v434 = vsel %vm355, %v433, %v432
    %v435 = vrot.slane %v388, 2
    %v436 = vsel %vm357, %v435, %v434
    %v438 = vmul.f32 %v421, %v436
    %v439 = vadd.f32 %v418, %v438
    %440 = vset.pattern.permute.xlu0 2
    %441 = vperm.xlu0 %440, %v372
    %v442 = vpop.permute.xlu0 %441
    %v444 = vrot.slane %v381, 2
    %v445 = vrot.slane %v382, 1
    %v446 = vsel %vm345, %v445, %v444
    %v447 = vsel %vm347, %v383, %v446
    %v448 = vrot.slane %v384, 7
    %v449 = vsel %vm349, %v448, %v447
    %v450 = vrot.slane %v385, 6
    %v451 = vsel %vm351, %v450, %v449
    %v452 = vrot.slane %v386, 5
    %v453 = vsel %vm353, %v452, %v451
    %v454 = vrot.slane %v387, 4
    %v455 = vsel %vm355, %v454, %v453
    %v456 = vrot.slane %v388, 3
    %v457 = vsel %vm357, %v456, %v455
    %v459 = vmul.f32 %v442, %v457
    %v460 = vadd.f32 %v439, %v459
    %461 = vset.pattern.permute.xlu0 3
    %462 = vperm.xlu0 %461, %v372
    %v463 = vpop.permute.xlu0 %462
    %v465 = vrot.slane %v381, 3
    %v466 = vrot.slane %v382, 2
    %v467 = vsel %vm345, %v466, %v465
    %v468 = vrot.slane %v383, 1
    %v469 = vsel %vm347, %v468, %v467
    %v470 = vsel %vm349, %v384, %v469
    %v471 = vrot.slane %v385, 7
    %v472 = vsel %vm351, %v471, %v470
    %v473 = vrot.slane %v386, 6
    %v474 = vsel %vm353, %v473, %v472
    %v475 = vrot.slane %v387, 5
    %v476 = vsel %vm355, %v475, %v474
    %v477 = vrot.slane %v388, 4
    %v478 = vsel %vm357, %v477, %v476
    %v480 = vmul.f32 %v463, %v478
    %v481 = vadd.f32 %v460, %v480
    %482 = vset.pattern.permute.xlu0 4
    %483 = vperm.xlu0 %482, %v372
    %v484 = vpop.permute.xlu0 %483
    %v486 = vrot.slane %v381, 4
    %v487 = vrot.slane %v382, 3
    %v488 = vsel %vm345, %v487, %v486
    %v489 = vrot.slane %v383, 2
    %v490 = vsel %vm347, %v489, %v488
    %v491 = vrot.slane %v384, 1
    %v492 = vsel %vm349, %v491, %v490
    %v493 = vsel %vm351, %v385, %v492
    %v494 = vrot.slane %v386, 7
    %v495 = vsel %vm353, %v494, %v493
    %v496 = vrot.slane %v387, 6
    %v497 = vsel %vm355, %v496, %v495
    %v498 = vrot.slane %v388, 5
    %v499 = vsel %vm357, %v498, %v497
    %v501 = vmul.f32 %v484, %v499
    %v502 = vadd.f32 %v481, %v501
    %503 = vset.pattern.permute.xlu0 5
    %504 = vperm.xlu0 %503, %v372
    %v505 = vpop.permute.xlu0 %504
    %v507 = vrot.slane %v381, 5
    %v508 = vrot.slane %v382, 4
    %v509 = vsel %vm345, %v508, %v507
    %v510 = vrot.slane %v383, 3
    %v511 = vsel %vm347, %v510, %v509
    %v512 = vrot.slane %v384, 2
    %v513 = vsel %vm349, %v512, %v511
    %v514 = vrot.slane %v385, 1
    %v515 = vsel %vm351, %v514, %v513
    %v516 = vsel %vm353, %v386, %v515
    %v517 = vrot.slane %v387, 7
    %v518 = vsel %vm355, %v517, %v516
    %v519 = vrot.slane %v388, 6
    %v520 = vsel %vm357, %v519, %v518
    %v522 = vmul.f32 %v505, %v520
    %v523 = vadd.f32 %v502, %v522
    %524 = vset.pattern.permute.xlu0 6
    %525 = vperm.xlu0 %524, %v372
    %v526 = vpop.permute.xlu0 %525
    %v528 = vrot.slane %v381, 6
    %v529 = vrot.slane %v382, 5
    %v530 = vsel %vm345, %v529, %v528
    %v531 = vrot.slane %v383, 4
    %v532 = vsel %vm347, %v531, %v530
    %v533 = vrot.slane %v384, 3
    %v534 = vsel %vm349, %v533, %v532
    %v535 = vrot.slane %v385, 2
    %v536 = vsel %vm351, %v535, %v534
    %v537 = vrot.slane %v386, 1
    %v538 = vsel %vm353, %v537, %v536
    %v539 = vsel %vm355, %v387, %v538
    %v540 = vrot.slane %v388, 7
    %v541 = vsel %vm357, %v540, %v539
    %v543 = vmul.f32 %v526, %v541
    %v544 = vadd.f32 %v523, %v543
    %545 = vset.pattern.permute.xlu0 7
    %546 = vperm.xlu0 %545, %v372
    %v547 = vpop.permute.xlu0 %546
    %v549 = vrot.slane %v381, 7
    %v550 = vrot.slane %v382, 6
    %v551 = vsel %vm345, %v550, %v549
    %v552 = vrot.slane %v383, 5
    %v553 = vsel %vm347, %v552, %v551
    %v554 = vrot.slane %v384, 4
    %v555 = vsel %vm349, %v554, %v553
    %v556 = vrot.slane %v385, 3
    %v557 = vsel %vm351, %v556, %v555
    %v558 = vrot.slane %v386, 2
    %v559 = vsel %vm353, %v558, %v557
    %v560 = vrot.slane %v387, 1
    %v561 = vsel %vm355, %v560, %v559
    %v562 = vsel %vm357, %v388, %v561
    %v564 = vmul.f32 %v547, %v562
    %v565 = vadd.f32 %v544, %v564
    %v566 = vld [vmem:[#allocation14] sm:$0xf]
    %v567 = vld [vmem:[#allocation14 + $0x4] sm:$0xf]
    %v568 = vld [vmem:[#allocation14 + $0x8] sm:$0xf]
    %v569 = vld [vmem:[#allocation14 + $0xc] sm:$0xf]
    %v570 = vpack.c.bf16 %v565, %v565
    %v571 = vld [vmem:[#allocation16] sm:$0xf]
    %v572 = vld [vmem:[#allocation16 + $0x4] sm:$0xf]
    %v573 = vld [vmem:[#allocation16 + $0x8] sm:$0xf]
    %v574 = vld [vmem:[#allocation16 + $0xc] sm:$0xf]
    %v579 = vunpack.c.l.b16 %v571
    %v580 = vunpack.c.l.b16 %v572
    %v581 = vunpack.c.l.b16 %v573
    %v582 = vunpack.c.l.b16 %v574
    %v583 = vpack.c.b16 %v580, %v579
    %v584 = vpack.c.b16 %v582, %v581
    %v588 = vsel %vm216, %v570, 0
    %590 = vmatpush.bf16.msra.mxu0 0
    %591 = vmatpush.bf16.msra.mxu0 0
    %592 = vmatpush.bf16.msra.mxu0 0
    %593 = vmatpush.bf16.msra.mxu0 0
    %594 = vmatpush.bf16.msra.mxu0 0
    %595 = vmatpush.bf16.msra.mxu0 0
    %596 = vmatpush.bf16.msra.mxu0 %v584
    %597 = vmatpush.bf16.msra.mxu0 %v583
    %598 = vmatmul.bf16.gmra.mxu0 %v588
    %v599 = vpop.f32.mrf.mxu0
    %v600 = vadd.f32 0.0, %v599
    %v601 = vpop.f32.mrf.mxu0
    %602 = vdwg.mxu0
    %v607 = vunpack.c.l.b16 %v566
    %v608 = vunpack.c.l.b16 %v567
    %v609 = vunpack.c.l.b16 %v568
    %v610 = vunpack.c.l.b16 %v569
    %v611 = vpack.c.b16 %v608, %v607
    %v612 = vpack.c.b16 %v610, %v609
    %v616 = vsel %vm216, %v197, 0
    %618 = vmatpush.bf16.msra.mxu0 0
    %619 = vmatpush.bf16.msra.mxu0 0
    %620 = vmatpush.bf16.msra.mxu0 0
    %621 = vmatpush.bf16.msra.mxu0 0
    %622 = vmatpush.bf16.msra.mxu0 0
    %623 = vmatpush.bf16.msra.mxu0 0
    %624 = vmatpush.bf16.msra.mxu0 %v612
    %625 = vmatpush.bf16.msra.mxu0 %v611
    %626 = vmatmul.bf16.gmra.mxu0 %v616
    %v627 = vpop.f32.mrf.mxu0
    %v628 = vadd.f32 %v600, %v627
    %v629 = vpop.f32.mrf.mxu0
    %630 = vdwg.mxu0
    %v631 = vld [vmem:[#allocation17] sm:$0xf]
    %v632 = vld [vmem:[#allocation17 + $0x4] sm:$0xf]
    %v633 = vld [vmem:[#allocation17 + $0x8] sm:$0xf]
    %v634 = vld [vmem:[#allocation17 + $0xc] sm:$0xf]
    %v639 = vunpack.c.l.b16 %v631
    %v640 = vunpack.c.l.b16 %v632
    %v641 = vunpack.c.l.b16 %v633
    %v642 = vunpack.c.l.b16 %v634
    %v643 = vpack.c.b16 %v640, %v639
    %v644 = vpack.c.b16 %v642, %v641
    %647 = vmatpush.bf16.msra.mxu0 0
    %648 = vmatpush.bf16.msra.mxu0 0
    %649 = vmatpush.bf16.msra.mxu0 0
    %650 = vmatpush.bf16.msra.mxu0 0
    %651 = vmatpush.bf16.msra.mxu0 0
    %652 = vmatpush.bf16.msra.mxu0 0
    %653 = vmatpush.bf16.msra.mxu0 %v644
    %654 = vmatpush.bf16.msra.mxu0 %v643
    %655 = vmatmul.bf16.gmra.mxu0 %v218
    %v656 = vpop.f32.mrf.mxu0
    %v657 = vadd.f32 0.0, %v656
    %v658 = vpop.f32.mrf.mxu0
    %659 = vdwg.mxu0
    %v660 = vadd.f32 %v628, %v657
    %v661 = vld [vmem:[%s11] sm:$0x1]
    %v663 = vperm.slane %v661, 0
    %v665 = vadd.f32 %v660, %v663
    %v666 = vxor.u32 %v665, 2147483648
    %v667 = vmul.f32 %v666, 1.442695
    %v668 = vpow.pop %v667
    %v669 = vadd.f32 %v668, 1.0
    %v670 = vrcp.pop %v669
    %v671 = vmul.f32 %v669, %v670
    %v672 = vsub.f32 1.0, %v671
    %v673 = vmul.f32 %v670, %v672
    %v674 = vadd.f32 %v670, %v673
    %vm675 = vweird.f32 %v669
    %vm676 = vweird.f32 %v670
    %vm677 = vmor %vm675, %vm676
    %v678 = vsel %vm677, %v670, %v674
    %v679 = vand.u32 2147483647, %v669
    %vm680 = vcmp.eq.f32.partialorder %v679, 8.507059e+37
    %v681 = vand.u32 %v669, 2147483648
    %v682 = vor.u32 1.1754944e-38, %v681
    %v683 = vsel %vm680, %v682, %v678
    %v684 = vmul.f32 1.0, %v683
    %v685 = vtanh.pop %v665
    %687 = vrot.lane.b32.xlu0 %v199, 32
    %v688 = vpop.permute.xlu0 %687
    %v690 = vmul.f32 %v684, %v688
    %692 = vrot.lane.b32.xlu0 %v685, 64
    %v693 = vpop.permute.xlu0 %692
    %v695 = vmul.f32 %v684, %v693
    %697 = vrot.lane.b32.xlu0 %v695, 32
    %v698 = vpop.permute.xlu0 %697
    %v700 = vadd.f32 %v690, %v698
    %v701 = vtanh.pop %v700
    %703 = vrot.lane.b32.xlu0 %v701, 64
    %v704 = vpop.permute.xlu0 %703
    %v706 = vmul.f32 %v684, %v704
    %708 = vrot.lane.b32.xlu0 %v706, 32
    %v709 = vpop.permute.xlu0 %708
    %711 = vst.msk [vmem:[#allocation19] sm:$0xff] %vm216, %v709
    %713 = vrot.lane.b32.xlu0 %v700, 96
    %v714 = vpop.permute.xlu0 %713
    %716 = vst.msk [vmem:[#allocation20] sm:$0xff] %vm216, %v714
    %v717 = vpack.c.bf16 %v706, %v706
    %719 = vrot.lane.b32.xlu0 %v717, 32
    %v720 = vpop.permute.xlu0 %719
    %vm722 = vcmask 257024
    %723 = vst.msk [vmem:[#allocation22] sm:$0xf] %vm722, %v720
    %724 = vst.msk [vmem:[#allocation23] sm:$0xf] %vm722, %v570
    // Predicated region
    $region90: #{tpu_custom_call.1} parent=1 // pred_check
      _
    $region91: #{tpu_custom_call.1} parent=1 // pred_check_branch
      %726 = sbr.rel (0) target = $region93
    $region92: #{tpu_custom_call.1} parent=1 // pred_region
      %728 = vsyncadd [#allocation4], 0
      %s730 = sshll.u32 [#allocation19], 4
      %s731 = int_to_ptr.vmem [resolvable:$true] %s730
      %s732 = sshll.u32 %s12, 4
      %s733 = int_to_ptr.hbm [resolvable:$true] %s732
      %735 = dma.vmem_to_hbm [thread:$0]  %s731, 128, %s733, [#allocation4]
    $region93: #{tpu_custom_call.1} parent=1 // pred_fallthru
      _
    // Predicated region
    $region94: #{tpu_custom_call.1} parent=1 // pred_check
      _
    $region95: #{tpu_custom_call.1} parent=1 // pred_check_branch
      %737 = sbr.rel (0) target = $region97
    $region96: #{tpu_custom_call.1} parent=1 // pred_region
      %739 = vsyncadd [#allocation21], 0
      %s741 = sshll.u32 [#allocation20], 4
      %s742 = int_to_ptr.vmem [resolvable:$true] %s741
      %s743 = sshll.u32 %s13, 4
      %s744 = int_to_ptr.hbm [resolvable:$true] %s743
      %746 = dma.vmem_to_hbm [thread:$0]  %s742, 128, %s744, [#allocation21]
    $region97: #{tpu_custom_call.1} parent=1 // pred_fallthru
      _
    // Predicated region
    $region98: #{tpu_custom_call.1} parent=1 // pred_check
      _
    $region99: #{tpu_custom_call.1} parent=1 // pred_check_branch
      %748 = sbr.rel (0) target = $region101
    $region100: #{tpu_custom_call.1} parent=1 // pred_region
      %750 = vsyncadd [#allocation21], 0
      %s752 = sshll.u32 [#allocation22], 4
      %s753 = int_to_ptr.vmem [resolvable:$true] %s752
      %s754 = sshll.u32 %s14, 4
      %s755 = int_to_ptr.hbm [resolvable:$true] %s754
      %757 = dma.vmem_to_hbm [thread:$0]  %s753, 64, %s755, [#allocation21]
    $region101: #{tpu_custom_call.1} parent=1 // pred_fallthru
      _
    // Predicated region
    $region102: #{tpu_custom_call.1} parent=1 // pred_check
      _
    $region103: #{tpu_custom_call.1} parent=1 // pred_check_branch
      %759 = sbr.rel (0) target = $region105
    $region104: #{tpu_custom_call.1} parent=1 // pred_region
      %761 = vsyncadd [#allocation24], 0
      %s763 = sshll.u32 [#allocation23], 4
      %s764 = int_to_ptr.vmem [resolvable:$true] %s763
      %s765 = sshll.u32 %s15, 4
      %s766 = int_to_ptr.hbm [resolvable:$true] %s765
      %768 = dma.vmem_to_hbm [thread:$0]  %s764, 64, %s766, [#allocation24]
    $region105: #{tpu_custom_call.1} parent=1 // pred_fallthru
      _
    // Predicated region
    $region106: #{tpu_custom_call.1} parent=1 // pred_check
      _
    $region107: #{tpu_custom_call.1} parent=1 // pred_check_branch
      %770 = sbr.rel (0) target = $region109
    $region108: #{tpu_custom_call.1} parent=1 // pred_region
      %772 = dma.done [#allocation4], 128
    $region109: #{tpu_custom_call.1} parent=1 // pred_fallthru
      _
    // Predicated region
    $region110: #{tpu_custom_call.1} parent=1 // pred_check
      _
    $region111: #{tpu_custom_call.1} parent=1 // pred_check_branch
      %774 = sbr.rel (0) target = $region113
    $region112: #{tpu_custom_call.1} parent=1 // pred_region
      %776 = dma.done [#allocation21], 128
    $region113: #{tpu_custom_call.1} parent=1 // pred_fallthru
      _
    // Predicated region
    $region114: #{tpu_custom_call.1} parent=1 // pred_check
      _
    $region115: #{tpu_custom_call.1} parent=1 // pred_check_branch
      %778 = sbr.rel (0) target = $region117
    $region116: #{tpu_custom_call.1} parent=1 // pred_region
      %780 = dma.done [#allocation21], 64
    $region117: #{tpu_custom_call.1} parent=1 // pred_fallthru
      _
    // Predicated region
    $region118: #{tpu_custom_call.1} parent=1 // pred_check
      _
    $region119: #{tpu_custom_call.1} parent=1 // pred_check_branch
      %782 = sbr.rel (0) target = $region121
    $region120: #{tpu_custom_call.1} parent=1 // pred_region
      %784 = dma.done [#allocation24], 64
    $region121: #{tpu_custom_call.1} parent=1 // pred_fallthru
      _
    %785 = vsyncpa [#allocation3], 1
    %786 = vsyncpa [#allocation6], 1
    %787 = vsyncpa [#allocation9], 1
    %788 = vsyncpa [#allocation12], 1
    %789 = vsyncpa [#allocation15], 1
    %790 = vsyncpa [#allocation18], 1
    %791 = vsyncpa [#allocation4], 1
    %792 = vsyncpa [#allocation21], 1
    %793 = vsyncpa [#allocation24], 1

</llo_original>
